<compile_context>
chip_gen: v7x
topology: tpu7x:2x2x1
jax: 0.10.0
libtpu: 0.0.40
codegen_flags: <defaults>
</compile_context>

<pallas_src>
import jax
import jax.numpy as jnp
from jax.experimental import pallas as pl
from jax.experimental.pallas import tpu as pltpu


def _planar_kernel(z_ref, u_ref, w_ref, b_ref, fz_ref, logdet_ref):
    # Load in native dtype, compute in f32.
    z = z_ref[...].astype(jnp.float32)                   # (TB, D)
    u = u_ref[...].astype(jnp.float32)                   # (TB, D)
    w = w_ref[...].astype(jnp.float32)                   # (TB, D)
    b = b_ref[...].astype(jnp.float32)                   # (TB, 1)

    # --- invertibility correction: u_hat --------------------------------
    uw = jnp.sum(w * u, axis=-1, keepdims=True)          # (TB, 1)
    # numerically stable softplus: max(x,0) + log1p(exp(-|x|))
    softplus_uw = jnp.maximum(uw, 0.0) + jnp.log1p(jnp.exp(-jnp.abs(uw)))
    m_uw = -1.0 + softplus_uw                            # (TB, 1)
    w_norm_sq = jnp.sum(w * w, axis=-1, keepdims=True)   # (TB, 1)
    u_hat = u + ((m_uw - uw) / w_norm_sq) * w            # (TB, D)

    # --- transformation ---------------------------------------------------
    wzb = jnp.sum(w * z, axis=-1, keepdims=True) + b     # (TB, 1)
    t = jnp.tanh(wzb)                                    # (TB, 1)
    fz_ref[...] = (z + u_hat * t).astype(fz_ref.dtype)   # (TB, D), input dtype

    # --- log|det J|: psi . u_hat == (1 - t^2) * (w . u_hat) ---------------
    # Exact identity: w . u_hat = w.u + ((m_uw - uw)/|w|^2) * (w.w) = m_uw,
    # so no extra (TB,D) multiply / reduce is needed.
    logdet_ref[...] = jnp.log(jnp.abs(1.0 + (1.0 - t * t) * m_uw))  # (TB, 1) f32
    # Note: padded rows of a partial last block may hit 0/0 (w_norm_sq==0) and
    # produce NaN, but they are masked out on writeback -> results are correct.


def _vmem_limit_bytes():
    """Generation-aware scoped-VMEM limit (v5e/v6e: 128 MiB phys, v7x: 64 MiB)."""
    physical = 64 * 1024 * 1024          # conservative fallback (v7x per-TC)
    try:
        info = pltpu.get_tpu_info()
        physical = int(getattr(info, "vmem_capacity_bytes", physical))
    except Exception:
        pass
    # Keep headroom for compiler scratch / double buffering; never ask for more
    # than 64 MiB scoped (plenty to saturate HBM on all three generations).
    return min(64 * 1024 * 1024, int(physical * 0.7))


def _choose_batch_tile(B, D, in_itemsize, tile_budget_bytes):
    """Largest batch tile (multiple of 8) whose double-buffered streaming
    footprint + f32 compute temporaries fit the budget, while guaranteeing
    >= 2 grid tiles whenever B permits (so v7x's 2 TensorCores both work)."""
    if B <= 8:
        return max(B, 1)
    # (z,u,w in + fz out) x 2 buffers in input dtype, plus ~5 f32 temporaries,
    # plus the (TB,1) columns.
    bytes_per_row = (8 * in_itemsize + 20) * max(D, 1) + 64
    tb = max(8, (tile_budget_bytes // bytes_per_row // 8) * 8)
    # Cap at ~half the batch so the "parallel" axis has >= 2 tiles to shard.
    half = max(8, (((B + 1) // 2) // 8) * 8)
    return int(min(tb, half))


@jax.jit
def planar_forward(zk, u, w, b):
    """Planar flow forward.

    zk: (B, D), u: (B, D, 1), w: (B, 1, D), b: (B, 1, 1).
    Returns (z, log_det_jacobian) with shapes (B, D) and (B,), matching PyTorch.
    """
    B, D = zk.shape
    assert u.shape == (B, D, 1) and w.shape == (B, 1, D) and b.shape == (B, 1, 1)

    # Metadata-only reshapes (contiguous row-major): no extra HBM pass, no cast.
    u2 = u.reshape(B, D)
    w2 = w.reshape(B, D)
    b2 = b.reshape(B, 1)

    in_dtype = zk.dtype
    itemsize = jnp.dtype(in_dtype).itemsize

    vmem_limit = _vmem_limit_bytes()
    tb = _choose_batch_tile(B, D, itemsize, (vmem_limit * 3) // 4)
    grid = (pl.cdiv(B, tb),)

    row_spec = pl.BlockSpec((tb, D), lambda i: (i, 0))
    col_spec = pl.BlockSpec((tb, 1), lambda i: (i, 0))

    cost = pl.CostEstimate(
        flops=10 * B * D,
        transcendentals=4 * B,
        bytes_accessed=(4 * B * D + B) * itemsize + 4 * B,
    )

    f_z, logdet = pl.pallas_call(
        _planar_kernel,
        out_shape=(
            jax.ShapeDtypeStruct((B, D), in_dtype),        # fz in input dtype
            jax.ShapeDtypeStruct((B, 1), jnp.float32),      # logdet tiny: keep f32
        ),
        grid=grid,
        in_specs=[row_spec, row_spec, row_spec, col_spec],
        out_specs=(row_spec, col_spec),
        compiler_params=pltpu.CompilerParams(
            dimension_semantics=("parallel",),   # batch tiles shard across TensorCores
            vmem_limit_bytes=vmem_limit,
        ),
        cost_estimate=cost,
    )(zk, u2, w2, b2)

    return f_z, logdet.reshape(B).astype(in_dtype)


def planar_ref(zk, u, w, b):
    """Pure-JAX mirror of the PyTorch forward (for validation)."""
    zk3 = zk[:, :, None]
    uw = jnp.matmul(w, u)                                # (B,1,1)
    m_uw = -1.0 + jax.nn.softplus(uw)
    w_norm_sq = jnp.sum(w ** 2, axis=2, keepdims=True)
    u_hat = u + (m_uw - uw) * jnp.transpose(w, (0, 2, 1)) / w_norm_sq
    wzb = jnp.matmul(w, zk3) + b
    z = (zk3 + u_hat * jnp.tanh(wzb))[:, :, 0]
    psi = w * (1.0 - jnp.tanh(wzb) ** 2)
    logdet = jnp.log(jnp.abs(1.0 + jnp.matmul(psi, u_hat)))
    return z, logdet[:, 0, 0]


if __name__ == "__main__":
    B, D = 8, 32
    key = jax.random.PRNGKey(0)
    kz, ku, kw, kb = jax.random.split(key, 4)
    zk = jax.random.normal(kz, (B, D), dtype=jnp.float32)
    u = jax.random.normal(ku, (B, D, 1), dtype=jnp.float32) * 0.3
    w = jax.random.normal(kw, (B, 1, D), dtype=jnp.float32) * 0.3
    b = jax.random.normal(kb, (B, 1, 1), dtype=jnp.float32) * 0.3

    z_out, logdet_out = planar_forward(zk, u, w, b)
    jax.block_until_ready((z_out, logdet_out))

    z_ref, ld_ref = planar_ref(zk, u, w, b)
    assert z_out.shape == (B, D) and logdet_out.shape == (B,)
    assert jnp.allclose(z_out, z_ref, atol=1e-4, rtol=1e-4), \
        float(jnp.max(jnp.abs(z_out - z_ref)))
    assert jnp.allclose(logdet_out, ld_ref, atol=1e-4, rtol=1e-4), \
        float(jnp.max(jnp.abs(logdet_out - ld_ref)))

    print("KERNEL_OK")
</pallas_src>

<mosaic_0001>
module attributes {stable_mosaic.version = 11 : i64} {
  func.func @_planar_kernel(%arg0: i32, %arg1: memref<8x32xf32, #tpu.memory_space<vmem>>, %arg2: memref<8x32xf32, #tpu.memory_space<vmem>>, %arg3: memref<8x32xf32, #tpu.memory_space<vmem>>, %arg4: memref<8x1xf32, #tpu.memory_space<vmem>>, %arg5: memref<8x32xf32, #tpu.memory_space<vmem>>, %arg6: memref<8x1xf32, #tpu.memory_space<vmem>>) attributes {dimension_semantics = [#tpu.dimension_semantics<parallel>], iteration_bounds = array<i64: 1>, scalar_prefetch = 0 : i64, scratch_operands = 0 : i64, tpu.core_type = #tpu.core_type<tc>, window_params = [{transform_indices = @transform_0, window_bounds = array<i64: 8, 32>}, {transform_indices = @transform_1, window_bounds = array<i64: 8, 32>}, {transform_indices = @transform_2, window_bounds = array<i64: 8, 32>}, {transform_indices = @transform_3, window_bounds = array<i64: 8, 1>}, {transform_indices = @transform_4, window_bounds = array<i64: 8, 32>}, {transform_indices = @transform_5, window_bounds = array<i64: 8, 1>}]} {
    %c0 = arith.constant 0 : index
    %c0_0 = arith.constant 0 : index
    %0 = vector.load %arg1[%c0, %c0_0] : memref<8x32xf32, #tpu.memory_space<vmem>>, vector<8x32xf32>
    %c0_1 = arith.constant 0 : index
    %c0_2 = arith.constant 0 : index
    %1 = vector.load %arg2[%c0_1, %c0_2] : memref<8x32xf32, #tpu.memory_space<vmem>>, vector<8x32xf32>
    %c0_3 = arith.constant 0 : index
    %c0_4 = arith.constant 0 : index
    %2 = vector.load %arg3[%c0_3, %c0_4] : memref<8x32xf32, #tpu.memory_space<vmem>>, vector<8x32xf32>
    %c0_5 = arith.constant 0 : index
    %c0_6 = arith.constant 0 : index
    %3 = vector.load %arg4[%c0_5, %c0_6] : memref<8x1xf32, #tpu.memory_space<vmem>>, vector<8x1xf32>
    %4 = arith.mulf %2, %1 : vector<8x32xf32>
    %cst = arith.constant dense<0.000000e+00> : vector<8xf32>
    %5 = vector.multi_reduction <add>, %4, %cst [1] : vector<8x32xf32> to vector<8xf32>
    %6 = vector.shape_cast %5 : vector<8xf32> to vector<8x1xf32>
    %cst_7 = arith.constant 0.000000e+00 : f32
    %7 = vector.broadcast %cst_7 : f32 to vector<8x1xf32>
    %8 = arith.maximumf %6, %7 : vector<8x1xf32>
    %9 = math.absf %6 : vector<8x1xf32>
    %cst_8 = arith.constant 0.000000e+00 : f32
    %10 = vector.broadcast %cst_8 : f32 to vector<8x1xf32>
    %11 = arith.subf %10, %9 : vector<8x1xf32>
    %12 = math.exp %11 : vector<8x1xf32>
    %13 = math.log1p %12 : vector<8x1xf32>
    %14 = arith.addf %8, %13 : vector<8x1xf32>
    %cst_9 = arith.constant -1.000000e+00 : f32
    %15 = vector.broadcast %cst_9 : f32 to vector<8x1xf32>
    %16 = arith.addf %15, %14 : vector<8x1xf32>
    %17 = arith.mulf %2, %2 : vector<8x32xf32>
    %cst_10 = arith.constant dense<0.000000e+00> : vector<8xf32>
    %18 = vector.multi_reduction <add>, %17, %cst_10 [1] : vector<8x32xf32> to vector<8xf32>
    %19 = vector.shape_cast %18 : vector<8xf32> to vector<8x1xf32>
    %20 = arith.subf %16, %6 : vector<8x1xf32>
    %21 = arith.divf %20, %19 : vector<8x1xf32>
    %22 = vector.broadcast %21 : vector<8x1xf32> to vector<8x32xf32>
    %23 = arith.mulf %22, %2 : vector<8x32xf32>
    %24 = arith.addf %1, %23 : vector<8x32xf32>
    %25 = arith.mulf %2, %0 : vector<8x32xf32>
    %cst_11 = arith.constant dense<0.000000e+00> : vector<8xf32>
    %26 = vector.multi_reduction <add>, %25, %cst_11 [1] : vector<8x32xf32> to vector<8xf32>
    %27 = vector.shape_cast %26 : vector<8xf32> to vector<8x1xf32>
    %28 = arith.addf %27, %3 : vector<8x1xf32>
    %29 = math.tanh %28 : vector<8x1xf32>
    %30 = vector.broadcast %29 : vector<8x1xf32> to vector<8x32xf32>
    %31 = arith.mulf %24, %30 : vector<8x32xf32>
    %32 = arith.addf %0, %31 : vector<8x32xf32>
    %c0_12 = arith.constant 0 : index
    %c0_13 = arith.constant 0 : index
    %33 = vector.load %arg5[%c0_12, %c0_13] : memref<8x32xf32, #tpu.memory_space<vmem>>, vector<8x32xf32>
    tpu.vector_store %arg5[%c0_12, %c0_13], %32 {strides = array<i32>} : memref<8x32xf32, #tpu.memory_space<vmem>>, vector<8x32xf32>,
    %34 = arith.mulf %29, %29 : vector<8x1xf32>
    %cst_14 = arith.constant 1.000000e+00 : f32
    %35 = vector.broadcast %cst_14 : f32 to vector<8x1xf32>
    %36 = arith.subf %35, %34 : vector<8x1xf32>
    %37 = arith.mulf %36, %16 : vector<8x1xf32>
    %cst_15 = arith.constant 1.000000e+00 : f32
    %38 = vector.broadcast %cst_15 : f32 to vector<8x1xf32>
    %39 = arith.addf %38, %37 : vector<8x1xf32>
    %40 = math.absf %39 : vector<8x1xf32>
    %41 = math.log %40 : vector<8x1xf32>
    %c0_16 = arith.constant 0 : index
    %c0_17 = arith.constant 0 : index
    %42 = vector.load %arg6[%c0_16, %c0_17] : memref<8x1xf32, #tpu.memory_space<vmem>>, vector<8x1xf32>
    tpu.vector_store %arg6[%c0_16, %c0_17], %41 {strides = array<i32>} : memref<8x1xf32, #tpu.memory_space<vmem>>, vector<8x1xf32>,
    return
  }
  func.func @transform_0(%arg0: i32) -> (i32, i32) {
    %c0_i32 = arith.constant 0 : i32
    %c0_i32_0 = arith.constant 0 : i32
    return %arg0, %c0_i32 : i32, i32
  }
  func.func @transform_1(%arg0: i32) -> (i32, i32) {
    %c0_i32 = arith.constant 0 : i32
    %c0_i32_0 = arith.constant 0 : i32
    return %arg0, %c0_i32 : i32, i32
  }
  func.func @transform_2(%arg0: i32) -> (i32, i32) {
    %c0_i32 = arith.constant 0 : i32
    %c0_i32_0 = arith.constant 0 : i32
    return %arg0, %c0_i32 : i32, i32
  }
  func.func @transform_3(%arg0: i32) -> (i32, i32) {
    %c0_i32 = arith.constant 0 : i32
    %c0_i32_0 = arith.constant 0 : i32
    return %arg0, %c0_i32 : i32, i32
  }
  func.func @transform_4(%arg0: i32) -> (i32, i32) {
    %c0_i32 = arith.constant 0 : i32
    %c0_i32_0 = arith.constant 0 : i32
    return %arg0, %c0_i32 : i32, i32
  }
  func.func @transform_5(%arg0: i32) -> (i32, i32) {
    %c0_i32 = arith.constant 0 : i32
    %c0_i32_0 = arith.constant 0 : i32
    return %arg0, %c0_i32 : i32, i32
  }
}

</mosaic_0001>

<llo_original>
// kernel: planar_forward.1
$region0: #{planar_forward.1}
  #allocation0 [shape = 'u32[]', space=smem, size = 0x4, offset = 0x4, fixed_abs, tag = 'smem constant byte address 0x4 - core index']
  #allocation1 [shape = 'u32[144,128]{1,0:T(1,128)}', space=vmem, size = 0x12000, scoped, tag = 'internal scratch']
  %s0 = inlined_call_operand.vmem [shape: f32[8,32], index: 0, kind: input, shape index: {}]
  %s1 = inlined_call_operand.vmem [shape: f32[8,32], index: 1, kind: input, shape index: {}]
  %s2 = inlined_call_operand.vmem [shape: f32[8,32], index: 2, kind: input, shape index: {}]
  %s3 = inlined_call_operand.vmem [shape: f32[8,1], index: 3, kind: input, shape index: {}]
  %s4 = inlined_call_operand.hbm [shape: f32[8,32], index: 4, kind: output, shape index: {0}]
  %s5 = inlined_call_operand.vmem [shape: f32[8,1], index: 5, kind: output, shape index: {1}]
  %6 = xla_tuple %s4, %s5
  %s7 = sld [smem:[#allocation0]]
  $region34: #{planar_forward.1} parent=0
    _
  %s9 = ssub.s32 1, %s7
  %s10 = scalar_select 0, %s9, %s7
  $region1: #{planar_forward.1} parent=0
    #allocation2 [shape = 'u8[4096]{0}', space=vmem, size = 0x1000, scoped, tag = 'output window, operand 0, single buffered']
    #allocation3 [shape = 's32[1]{0}', space=sflag, size = 0x4, scoped, tag = 'scoped memory for planar_forward.1']
    %11 = vsyncpa [#allocation3], 0
    // Predicated region
    $region2: #{planar_forward.1} parent=1 // pred_check
      _
    $region3: #{planar_forward.1} parent=1 // pred_check_branch
      %13 = sbr.rel (0) target = $region5
    $region4: #{planar_forward.1} parent=1 // pred_region
      _
    $region5: #{planar_forward.1} parent=1 // pred_fallthru
      _
    // Predicated region
    $region6: #{planar_forward.1} parent=1 // pred_check
      _
    $region7: #{planar_forward.1} parent=1 // pred_check_branch
      %15 = sbr.rel (0) target = $region9
    $region8: #{planar_forward.1} parent=1 // pred_region
      _
    $region9: #{planar_forward.1} parent=1 // pred_fallthru
      _
    // Predicated region
    $region10: #{planar_forward.1} parent=1 // pred_check
      _
    $region11: #{planar_forward.1} parent=1 // pred_check_branch
      %17 = sbr.rel (0) target = $region13
    $region12: #{planar_forward.1} parent=1 // pred_region
      _
    $region13: #{planar_forward.1} parent=1 // pred_fallthru
      _
    // Predicated region
    $region14: #{planar_forward.1} parent=1 // pred_check
      _
    $region15: #{planar_forward.1} parent=1 // pred_check_branch
      %19 = sbr.rel (0) target = $region17
    $region16: #{planar_forward.1} parent=1 // pred_region
      _
    $region17: #{planar_forward.1} parent=1 // pred_fallthru
      _
    %v20 = vld [vmem:[%s0] sm:$0xff]
    %v21 = vld [vmem:[%s1] sm:$0xff]
    %v22 = vld [vmem:[%s2] sm:$0xff]
    %v23 = vld [vmem:[%s3] sm:$0xff]
    %v24 = vmul.f32 %v22, %v21
    %vm25 = vcmask 261120
    %v26 = vsel %vm25, %v24, 0.0
    %27 = vadd.xlane.f32.xlu0 %v26
    %v28 = vpop.xlane.xlu0 %27
    %v29 = vmax.f32 %v28, 0.0
    %v30 = vand.u32 2147483647, %v28
    %v31 = vsub.f32 0.0, %v30
    %v32 = vmul.f32 %v31, 1.442695
    %v33 = vpow.pop %v32
    %v34 = vadd.f32 %v33, 1.0
    %v35 = vlog2.pop %v34
    %v36 = vmul.f32 %v35, 0.6931472
    %v37 = vmul.f32 -0.5, %v33
    %v38 = vadd.f32 %v37, 1.0
    %v39 = vmul.f32 %v38, %v33
    %v40 = vand.u32 2147483647, %v33
    %vm41 = vcmp.lt.f32.partialorder %v40, 0.0004427343
    %v42 = vsel %vm41, %v39, %v36
    %v43 = vadd.f32 %v29, %v42
    %v44 = vadd.f32 %v43, -1.0
    %v45 = vmul.f32 %v22, %v22
    %v46 = vsel %vm25, %v45, 0.0
    %47 = vadd.xlane.f32.xlu0 %v46
    %v48 = vpop.xlane.xlu0 %47
    %v49 = vsub.f32 %v44, %v28
    %v50 = vrcp.pop %v48
    %v51 = vmul.f32 %v49, %v50
    %v52 = vmul.f32 %v51, %v22
    %v53 = vadd.f32 %v21, %v52
    %v54 = vmul.f32 %v22, %v20
    %v55 = vsel %vm25, %v54, 0.0
    %56 = vadd.xlane.f32.xlu0 %v55
    %v57 = vpop.xlane.xlu0 %56
    %v58 = vadd.f32 %v57, %v23
    %v59 = vtanh.pop %v58
    %61 = vset.pattern.permute.xlu0 0
    %62 = vperm.xlu0 %61, %v59
    %v63 = vpop.permute.xlu0 %62
    %v65 = vmul.f32 %v53, %v63
    %v66 = vadd.f32 %v20, %v65
    %67 = vst.msk [vmem:[#allocation2] sm:$0xff] %vm25, %v66
    %v68 = vmul.f32 %v59, %v59
    %v69 = vsub.f32 1.0, %v68
    %v70 = vmul.f32 %v69, %v44
    %v71 = vadd.f32 %v70, 1.0
    %v72 = vand.u32 2147483647, %v71
    %v73 = vlog2.pop %v72
    %v74 = vmul.f32 %v73, 0.6931472
    %vm75 = vcmask 7168
    %76 = vst.msk [vmem:[%s5] sm:$0xff] %vm75, %v74
    // Predicated region
    $region18: #{planar_forward.1} parent=1 // pred_check
      _
    $region19: #{planar_forward.1} parent=1 // pred_check_branch
      %78 = sbr.rel (0) target = $region21
    $region20: #{planar_forward.1} parent=1 // pred_region
      %s80 = ssub.s32 128, 128
      %81 = vsyncadd [#allocation3], %s80
      %s83 = sshll.u32 [#allocation2], 4
      %s84 = int_to_ptr.vmem [resolvable:$true] %s83
      %86 = dma.vmem_to_hbm [thread:$0]  %s84, 128, %s4, [#allocation3]
    $region21: #{planar_forward.1} parent=1 // pred_fallthru
      _
    // Predicated region
    $region22: #{planar_forward.1} parent=1 // pred_check
      _
    $region23: #{planar_forward.1} parent=1 // pred_check_branch
      %88 = sbr.rel (0) target = $region25
    $region24: #{planar_forward.1} parent=1 // pred_region
      _
    $region25: #{planar_forward.1} parent=1 // pred_fallthru
      _
    // Predicated region
    $region26: #{planar_forward.1} parent=1 // pred_check
      _
    $region27: #{planar_forward.1} parent=1 // pred_check_branch
      %90 = sbr.rel (0) target = $region29
    $region28: #{planar_forward.1} parent=1 // pred_region
      %91 = dma.done [#allocation3], 128
    $region29: #{planar_forward.1} parent=1 // pred_fallthru
      _
    // Predicated region
    $region30: #{planar_forward.1} parent=1 // pred_check
      _
    $region31: #{planar_forward.1} parent=1 // pred_check_branch
      %93 = sbr.rel (0) target = $region33
    $region32: #{planar_forward.1} parent=1 // pred_region
      _
    $region33: #{planar_forward.1} parent=1 // pred_fallthru
      _
    %94 = vsyncpa [#allocation3], 1

</llo_original>
